<compile_context>
chip_gen: v6e
topology: v6e:2x2x1
jax: 0.10.0
libtpu: 0.0.40
codegen_flags: <defaults>
</compile_context>

<pallas_src>
import jax
import jax.numpy as jnp
from jax.experimental import pallas as pl
from jax.experimental.pallas import tpu as pltpu


def mlp_kernel(x_ref, wprev_ref, wmid_ref, wnext_ref, wpool_ref, bias_ref, o_ref):
    bt, L, C = x_ref.shape
    M = bt * L

    xb = x_ref[...]                       # (Bt, L, C) f32, channels-last
    x2 = xb.reshape(M, C)                 # rows are batch-major, position-minor

    # +-1 position shifts for the k=3 conv (its taps are pre-folded into the FC
    # weights): sublane roll on the XLU + zero the rows that wrapped across a
    # batch/sequence boundary.  No concatenate copies.
    row = jax.lax.broadcasted_iota(jnp.int32, (M, C), 0)
    x_prev = jnp.where(row % L == 0, 0.0,
                       pltpu.roll(x2, shift=1, axis=0))          # row m <- x[m-1]
    x_next = jnp.where(row % L == (L - 1), 0.0,
                       pltpu.roll(x2, shift=M - 1, axis=0))      # (== shift -1) row m <- x[m+1]

    # Three fused matmuls: bf16 MXU inputs, f32 accumulation.
    bf = jnp.bfloat16
    acc = jnp.dot(x2.astype(bf), wmid_ref[...],
                  preferred_element_type=jnp.float32)
    acc += jnp.dot(x_prev.astype(bf), wprev_ref[...],
                   preferred_element_type=jnp.float32)
    acc += jnp.dot(x_next.astype(bf), wnext_ref[...],
                   preferred_element_type=jnp.float32)

    # Pooled branch: per-batch mean over L, one tiny matmul against the pre-folded
    # (conv2 . fc-block) weight; the single fused bias row is merged into gc here.
    mean_x = jnp.mean(xb, axis=1)                                # (Bt, C) f32
    gc = jnp.dot(mean_x.astype(bf), wpool_ref[...],
                 preferred_element_type=jnp.float32) + bias_ref[...]   # (Bt, C)

    out = acc.reshape(bt, L, C) + gc.reshape(bt, 1, C)           # broadcast over L
    o_ref[...] = out.astype(o_ref.dtype)


def _pick_block_batch(B, L):
    """Batch elements per grid step: target ~256 matmul rows, keep >=2 grid steps."""
    bt = max(1, min(B, 256 // max(L, 1)))
    if B >= 2:
        bt = max(1, min(bt, B // 2))      # leave work for the 2nd v7x TensorCore
    while B % bt:
        bt -= 1
    return bt


def mlp_forward_nlc(x_nlc, fused_params, *, block_b=None):
    """Channels-last forward: x_nlc (B, L, C) float -> (B, L, C) float32."""
    B, L, C = x_nlc.shape
    wprev, wmid, wnext, wpool, bias = fused_params
    if block_b is None:
        block_b = _pick_block_batch(B, L)
    assert B % block_b == 0

    x_spec = pl.BlockSpec((block_b, L, C), lambda i: (i, 0, 0))
    # Constant-index weight / bias specs.  (If C grows large, single-buffer these
    # with pipeline_mode=pl.Buffered(1); negligible VMEM at C=128.)
    mat_spec = pl.BlockSpec((C, C), lambda i: (0, 0))
    bias_spec = pl.BlockSpec((1, C), lambda i: (0, 0))

    return pl.pallas_call(
        mlp_kernel,
        out_shape=jax.ShapeDtypeStruct((B, L, C), jnp.float32),
        grid_spec=pltpu.PrefetchScalarGridSpec(
            num_scalar_prefetch=0,
            grid=(B // block_b,),
            in_specs=[x_spec, mat_spec, mat_spec, mat_spec, mat_spec, bias_spec],
            out_specs=x_spec,
        ),
        compiler_params=pltpu.CompilerParams(
            dimension_semantics=("parallel",)),
    )(x_nlc, wprev, wmid, wnext, wpool, bias)


def mlp_forward(x_ncl, fused_params):
    """PyTorch-compatible NCL interface: (B, C, L) -> (B, C, L)."""
    # TODO(synk): in a real pipeline keep activations NLC between ops and call
    # mlp_forward_nlc directly -- these two transposes are extra HBM passes.
    x_nlc = jnp.transpose(x_ncl, (0, 2, 1))
    out_nlc = mlp_forward_nlc(x_nlc, fused_params)
    return jnp.transpose(out_nlc, (0, 2, 1))


def fuse_params(raw, compute_dtype=jnp.bfloat16):
    """Fold conv1/conv2 and the Linear into 4 (C,C) right-multiply weights + 1 bias."""
    w1, b1, w2, b2, wfc, bfc = raw
    C = b1.shape[0]
    W10, W11, W12 = (w1[:, :, k].T for k in range(3))     # (Cin, Cout) per conv tap
    W2 = w2[:, :, 0].T
    Wa, Wb, Wc = wfc[:, :C].T, wfc[:, C:2 * C].T, wfc[:, 2 * C:].T
    wprev = W10 @ Wb
    wmid = Wa + W11 @ Wb
    wnext = W12 @ Wb
    wpool = W2 @ Wc
    bias = b1 @ Wb + b2 @ Wc + bfc                         # (C,)
    return (wprev.astype(compute_dtype), wmid.astype(compute_dtype),
            wnext.astype(compute_dtype), wpool.astype(compute_dtype),
            bias.astype(jnp.float32).reshape(1, C))


def init_params(key, feature_dim):
    C = feature_dim
    ks = jax.random.split(key, 6)
    scale = 0.05
    w1 = scale * jax.random.normal(ks[0], (C, C, 3), jnp.float32)    # Conv1d(C,C,3)
    b1 = scale * jax.random.normal(ks[1], (C,), jnp.float32)
    w2 = scale * jax.random.normal(ks[2], (C, C, 1), jnp.float32)    # Conv1d(C,C,1)
    b2 = scale * jax.random.normal(ks[3], (C,), jnp.float32)
    wfc = scale * jax.random.normal(ks[4], (C, 3 * C), jnp.float32)  # Linear(3C, C)
    bfc = scale * jax.random.normal(ks[5], (C,), jnp.float32)
    raw = (w1, b1, w2, b2, wfc, bfc)
    return fuse_params(raw), raw


def mlp_reference(x_ncl, raw):
    """Pure-JAX f32 reference mirroring the PyTorch forward (for verification)."""
    w1, b1, w2, b2, wfc, bfc = raw
    B, C, L = x_ncl.shape
    xp = jnp.pad(x_ncl, ((0, 0), (0, 0), (1, 1)))
    out1 = (jnp.einsum('bil,oi->bol', xp[:, :, 0:L], w1[:, :, 0]) +
            jnp.einsum('bil,oi->bol', xp[:, :, 1:L + 1], w1[:, :, 1]) +
            jnp.einsum('bil,oi->bol', xp[:, :, 2:L + 2], w1[:, :, 2]) +
            b1[None, :, None])
    pooled = jnp.mean(x_ncl, axis=2, keepdims=True)                  # (B, C, 1)
    out2 = jnp.einsum('bil,oi->bol', pooled, w2[:, :, 0]) + b2[None, :, None]
    out2 = jnp.broadcast_to(out2, (B, C, L))
    cat = jnp.concatenate([x_ncl, out1, out2], axis=1)               # (B, 3C, L)
    out = jnp.einsum('bcl,oc->bol', cat, wfc) + bfc[None, :, None]
    return out


if __name__ == "__main__":
    B, C, L = 8, 128, 16
    key = jax.random.PRNGKey(0)
    kx, kp = jax.random.split(key)
    x = jax.random.normal(kx, (B, C, L), jnp.float32)
    fused, raw = init_params(kp, C)

    out = jax.block_until_ready(jax.jit(mlp_forward)(x, fused))
    ref = mlp_reference(x, raw)

    assert out.shape == (B, C, L)
    # bf16 MXU inputs with f32 accumulation -> loosened tolerance vs the f32 reference.
    assert jnp.allclose(out, ref, atol=5e-2, rtol=5e-2), (
        "mismatch vs reference, max abs err = "
        f"{float(jnp.max(jnp.abs(out - ref)))}")
    print("KERNEL_OK")
</pallas_src>

<mosaic_0001>
module attributes {stable_mosaic.version = 11 : i64} {
  func.func @mlp_kernel(%arg0: i32, %arg1: memref<4x16x128xf32, #tpu.memory_space<vmem>>, %arg2: memref<128x128xbf16, #tpu.memory_space<vmem>>, %arg3: memref<128x128xbf16, #tpu.memory_space<vmem>>, %arg4: memref<128x128xbf16, #tpu.memory_space<vmem>>, %arg5: memref<128x128xbf16, #tpu.memory_space<vmem>>, %arg6: memref<1x128xf32, #tpu.memory_space<vmem>>, %arg7: memref<4x16x128xf32, #tpu.memory_space<vmem>>) attributes {dimension_semantics = [#tpu.dimension_semantics<parallel>], iteration_bounds = array<i64: 2>, scalar_prefetch = 0 : i64, scratch_operands = 0 : i64, tpu.core_type = #tpu.core_type<tc>, window_params = [{transform_indices = @transform_0, window_bounds = array<i64: 4, 16, 128>}, {pipeline_mode = #tpu.pipeline_mode<synchronous>, transform_indices = @transform_1, window_bounds = array<i64: 128, 128>}, {pipeline_mode = #tpu.pipeline_mode<synchronous>, transform_indices = @transform_2, window_bounds = array<i64: 128, 128>}, {pipeline_mode = #tpu.pipeline_mode<synchronous>, transform_indices = @transform_3, window_bounds = array<i64: 128, 128>}, {pipeline_mode = #tpu.pipeline_mode<synchronous>, transform_indices = @transform_4, window_bounds = array<i64: 128, 128>}, {pipeline_mode = #tpu.pipeline_mode<synchronous>, transform_indices = @transform_5, window_bounds = array<i64: 1, 128>}, {transform_indices = @transform_6, window_bounds = array<i64: 4, 16, 128>}]} {
    %c0 = arith.constant 0 : index
    %c0_0 = arith.constant 0 : index
    %c0_1 = arith.constant 0 : index
    %0 = vector.load %arg1[%c0, %c0_0, %c0_1] : memref<4x16x128xf32, #tpu.memory_space<vmem>>, vector<4x16x128xf32>
    %1 = vector.shape_cast %0 : vector<4x16x128xf32> to vector<64x128xf32>
    %2 = tpu.iota {dimensions = array<i32: 0>} : vector<64x128xi32>
    %c16_i32 = arith.constant 16 : i32
    %c0_i32 = arith.constant 0 : i32
    %3 = arith.cmpi eq, %c16_i32, %c0_i32 : i32
    %c1_i32 = arith.constant 1 : i32
    %4 = arith.select %3, %c1_i32, %c16_i32 : i32
    %5 = vector.broadcast %4 : i32 to vector<64x128xi32>
    %6 = arith.remsi %2, %5 : vector<64x128xi32>
    %c0_i32_2 = arith.constant 0 : i32
    %7 = vector.broadcast %c0_i32_2 : i32 to vector<64x128xi32>
    %8 = arith.cmpi ne, %6, %7 : vector<64x128xi32>
    %c0_i32_3 = arith.constant 0 : i32
    %9 = vector.broadcast %c0_i32_3 : i32 to vector<64x128xi32>
    %10 = arith.cmpi slt, %6, %9 : vector<64x128xi32>
    %c0_i32_4 = arith.constant 0 : i32
    %11 = arith.cmpi slt, %4, %c0_i32_4 : i32
    %12 = vector.broadcast %11 : i1 to vector<64x128xi1>
    %13 = vector.broadcast %12 : vector<64x128xi1> to vector<64x128xi1>
    %14 = arith.xori %10, %13 : vector<64x128xi1>
    %15 = arith.andi %14, %8 : vector<64x128xi1>
    %16 = vector.broadcast %4 : i32 to vector<64x128xi32>
    %17 = arith.addi %6, %16 : vector<64x128xi32>
    %18 = arith.select %15, %17, %6 : vector<64x128xi1>, vector<64x128xi32>
    %c0_i32_5 = arith.constant 0 : i32
    %19 = vector.broadcast %c0_i32_5 : i32 to vector<64x128xi32>
    %20 = arith.cmpi eq, %18, %19 : vector<64x128xi32>
    %c1_i32_6 = arith.constant 1 : i32
    %21 = tpu.dynamic_rotate %1 by %c1_i32_6 dim 0 : vector<64x128xf32>, i32 -> vector<64x128xf32>
    %cst = arith.constant 0.000000e+00 : f32
    %22 = vector.broadcast %cst : f32 to vector<64x128xf32>
    %23 = arith.select %20, %22, %21 : vector<64x128xi1>, vector<64x128xf32>
    %c16_i32_7 = arith.constant 16 : i32
    %c0_i32_8 = arith.constant 0 : i32
    %24 = arith.cmpi eq, %c16_i32_7, %c0_i32_8 : i32
    %c1_i32_9 = arith.constant 1 : i32
    %25 = arith.select %24, %c1_i32_9, %c16_i32_7 : i32
    %26 = vector.broadcast %25 : i32 to vector<64x128xi32>
    %27 = arith.remsi %2, %26 : vector<64x128xi32>
    %c0_i32_10 = arith.constant 0 : i32
    %28 = vector.broadcast %c0_i32_10 : i32 to vector<64x128xi32>
    %29 = arith.cmpi ne, %27, %28 : vector<64x128xi32>
    %c0_i32_11 = arith.constant 0 : i32
    %30 = vector.broadcast %c0_i32_11 : i32 to vector<64x128xi32>
    %31 = arith.cmpi slt, %27, %30 : vector<64x128xi32>
    %c0_i32_12 = arith.constant 0 : i32
    %32 = arith.cmpi slt, %25, %c0_i32_12 : i32
    %33 = vector.broadcast %32 : i1 to vector<64x128xi1>
    %34 = vector.broadcast %33 : vector<64x128xi1> to vector<64x128xi1>
    %35 = arith.xori %31, %34 : vector<64x128xi1>
    %36 = arith.andi %35, %29 : vector<64x128xi1>
    %37 = vector.broadcast %25 : i32 to vector<64x128xi32>
    %38 = arith.addi %27, %37 : vector<64x128xi32>
    %39 = arith.select %36, %38, %27 : vector<64x128xi1>, vector<64x128xi32>
    %c15_i32 = arith.constant 15 : i32
    %40 = vector.broadcast %c15_i32 : i32 to vector<64x128xi32>
    %41 = arith.cmpi eq, %39, %40 : vector<64x128xi32>
    %c63_i32 = arith.constant 63 : i32
    %42 = tpu.dynamic_rotate %1 by %c63_i32 dim 0 : vector<64x128xf32>, i32 -> vector<64x128xf32>
    %cst_13 = arith.constant 0.000000e+00 : f32
    %43 = vector.broadcast %cst_13 : f32 to vector<64x128xf32>
    %44 = arith.select %41, %43, %42 : vector<64x128xi1>, vector<64x128xf32>
    %45 = arith.truncf %1 : vector<64x128xf32> to vector<64x128xbf16>
    %c0_14 = arith.constant 0 : index
    %c0_15 = arith.constant 0 : index
    %46 = vector.load %arg3[%c0_14, %c0_15] : memref<128x128xbf16, #tpu.memory_space<vmem>>, vector<128x128xbf16>
    %cst_16 = arith.constant dense<0.000000e+00> : vector<64x128xf32>
    %47 = tpu.matmul %45, %46, %cst_16 {dimension_numbers = #tpu.dot_dimension_numbers<[1], [0], [0], [1], [0, 0, 1, 1], [], []>} : vector<64x128xbf16>, vector<128x128xbf16>, vector<64x128xf32> -> vector<64x128xf32>
    %48 = arith.truncf %23 : vector<64x128xf32> to vector<64x128xbf16>
    %c0_17 = arith.constant 0 : index
    %c0_18 = arith.constant 0 : index
    %49 = vector.load %arg2[%c0_17, %c0_18] : memref<128x128xbf16, #tpu.memory_space<vmem>>, vector<128x128xbf16>
    %cst_19 = arith.constant dense<0.000000e+00> : vector<64x128xf32>
    %50 = tpu.matmul %48, %49, %cst_19 {dimension_numbers = #tpu.dot_dimension_numbers<[1], [0], [0], [1], [0, 0, 1, 1], [], []>} : vector<64x128xbf16>, vector<128x128xbf16>, vector<64x128xf32> -> vector<64x128xf32>
    %51 = arith.addf %47, %50 : vector<64x128xf32>
    %52 = arith.truncf %44 : vector<64x128xf32> to vector<64x128xbf16>
    %c0_20 = arith.constant 0 : index
    %c0_21 = arith.constant 0 : index
    %53 = vector.load %arg4[%c0_20, %c0_21] : memref<128x128xbf16, #tpu.memory_space<vmem>>, vector<128x128xbf16>
    %cst_22 = arith.constant dense<0.000000e+00> : vector<64x128xf32>
    %54 = tpu.matmul %52, %53, %cst_22 {dimension_numbers = #tpu.dot_dimension_numbers<[1], [0], [0], [1], [0, 0, 1, 1], [], []>} : vector<64x128xbf16>, vector<128x128xbf16>, vector<64x128xf32> -> vector<64x128xf32>
    %55 = arith.addf %51, %54 : vector<64x128xf32>
    %cst_23 = arith.constant dense<0.000000e+00> : vector<4x128xf32>
    %56 = vector.multi_reduction <add>, %0, %cst_23 [1] : vector<4x16x128xf32> to vector<4x128xf32>
    %cst_24 = arith.constant 1.600000e+01 : f32
    %57 = vector.broadcast %cst_24 : f32 to vector<4x128xf32>
    %58 = arith.divf %56, %57 : vector<4x128xf32>
    %59 = arith.truncf %58 : vector<4x128xf32> to vector<4x128xbf16>
    %c0_25 = arith.constant 0 : index
    %c0_26 = arith.constant 0 : index
    %60 = vector.load %arg5[%c0_25, %c0_26] : memref<128x128xbf16, #tpu.memory_space<vmem>>, vector<128x128xbf16>
    %cst_27 = arith.constant dense<0.000000e+00> : vector<4x128xf32>
    %61 = tpu.matmul %59, %60, %cst_27 {dimension_numbers = #tpu.dot_dimension_numbers<[1], [0], [0], [1], [0, 0, 1, 1], [], []>} : vector<4x128xbf16>, vector<128x128xbf16>, vector<4x128xf32> -> vector<4x128xf32>
    %c0_28 = arith.constant 0 : index
    %c0_29 = arith.constant 0 : index
    %62 = vector.load %arg6[%c0_28, %c0_29] : memref<1x128xf32, #tpu.memory_space<vmem>>, vector<1x128xf32>
    %63 = vector.broadcast %62 : vector<1x128xf32> to vector<4x128xf32>
    %64 = arith.addf %61, %63 : vector<4x128xf32>
    %65 = vector.shape_cast %55 : vector<64x128xf32> to vector<4x16x128xf32>
    %66 = vector.shape_cast %64 : vector<4x128xf32> to vector<4x1x128xf32>
    %67 = vector.broadcast %66 : vector<4x1x128xf32> to vector<4x16x128xf32>
    %68 = arith.addf %65, %67 : vector<4x16x128xf32>
    %c0_30 = arith.constant 0 : index
    %c0_31 = arith.constant 0 : index
    %c0_32 = arith.constant 0 : index
    %69 = vector.load %arg7[%c0_30, %c0_31, %c0_32] : memref<4x16x128xf32, #tpu.memory_space<vmem>>, vector<4x16x128xf32>
    tpu.vector_store %arg7[%c0_30, %c0_31, %c0_32], %68 {strides = array<i32>} : memref<4x16x128xf32, #tpu.memory_space<vmem>>, vector<4x16x128xf32>,
    return
  }
  func.func @transform_0(%arg0: i32) -> (i32, i32, i32) {
    %c0_i32 = arith.constant 0 : i32
    %c0_i32_0 = arith.constant 0 : i32
    %c0_i32_1 = arith.constant 0 : i32
    return %arg0, %c0_i32, %c0_i32_0 : i32, i32, i32
  }
  func.func @transform_1(%arg0: i32) -> (i32, i32) {
    %c0_i32 = arith.constant 0 : i32
    %c0_i32_0 = arith.constant 0 : i32
    %c0_i32_1 = arith.constant 0 : i32
    return %c0_i32, %c0_i32_0 : i32, i32
  }
  func.func @transform_2(%arg0: i32) -> (i32, i32) {
    %c0_i32 = arith.constant 0 : i32
    %c0_i32_0 = arith.constant 0 : i32
    %c0_i32_1 = arith.constant 0 : i32
    return %c0_i32, %c0_i32_0 : i32, i32
  }
  func.func @transform_3(%arg0: i32) -> (i32, i32) {
    %c0_i32 = arith.constant 0 : i32
    %c0_i32_0 = arith.constant 0 : i32
    %c0_i32_1 = arith.constant 0 : i32
    return %c0_i32, %c0_i32_0 : i32, i32
  }
  func.func @transform_4(%arg0: i32) -> (i32, i32) {
    %c0_i32 = arith.constant 0 : i32
    %c0_i32_0 = arith.constant 0 : i32
    %c0_i32_1 = arith.constant 0 : i32
    return %c0_i32, %c0_i32_0 : i32, i32
  }
  func.func @transform_5(%arg0: i32) -> (i32, i32) {
    %c0_i32 = arith.constant 0 : i32
    %c0_i32_0 = arith.constant 0 : i32
    %c0_i32_1 = arith.constant 0 : i32
    return %c0_i32, %c0_i32_0 : i32, i32
  }
  func.func @transform_6(%arg0: i32) -> (i32, i32, i32) {
    %c0_i32 = arith.constant 0 : i32
    %c0_i32_0 = arith.constant 0 : i32
    %c0_i32_1 = arith.constant 0 : i32
    return %arg0, %c0_i32, %c0_i32_0 : i32, i32, i32
  }
}

</mosaic_0001>

<llo_original>
// kernel: mlp_forward.1
$region0: #{mlp_forward.1}
  #allocation0 [shape = 'u32[]', space=smem, size = 0x4, offset = 0x4, fixed_abs, tag = 'smem constant byte address 0x4 - core index']
  #allocation1 [shape = 'u32[144,128]{1,0:T(1,128)}', space=vmem, size = 0x12000, scoped, tag = 'internal scratch']
  %s0 = inlined_call_operand.hbm [shape: f32[8,16,128], index: 0, kind: input, shape index: {}]
  %s1 = inlined_call_operand.hbm [shape: bf16[128,128], index: 1, kind: input, shape index: {}]
  %s2 = inlined_call_operand.hbm [shape: bf16[128,128], index: 2, kind: input, shape index: {}]
  %s3 = inlined_call_operand.hbm [shape: bf16[128,128], index: 3, kind: input, shape index: {}]
  %s4 = inlined_call_operand.hbm [shape: bf16[128,128], index: 4, kind: input, shape index: {}]
  %s5 = inlined_call_operand.vmem [shape: f32[1,128], index: 5, kind: input, shape index: {}]
  %s6 = inlined_call_operand.hbm [shape: f32[8,16,128], index: 6, kind: output, shape index: {}]
  %s7 = sld [smem:[#allocation0]]
  $region77: #{mlp_forward.1} parent=0
    _
  %s9 = ssub.s32 1, %s7
  %s10 = scalar_select 0, %s9, %s7
  $region1: #{mlp_forward.1} parent=0
    #allocation2 [shape = 'u8[65536]{0}', space=vmem, size = 0x10000, scoped, tag = 'input window, operand 0']
    #allocation3 [shape = 's32[2]{0}', space=sflag, size = 0x8, scoped, tag = 'scoped memory for mlp_forward.1']
    #allocation4 [shape = 's32[2]{0}', space=sflag, size = 0x8, scoped, tag = 'scoped memory for mlp_forward.1']
    #allocation5 [shape = 'u8[32768]{0}', space=vmem, size = 0x8000, scoped, tag = 'input window, operand 1, single buffered']
    #allocation6 [shape = 's32[1]{0}', space=sflag, size = 0x4, scoped, tag = 'scoped memory for mlp_forward.1']
    #allocation7 [shape = 'u8[32768]{0}', space=vmem, size = 0x8000, scoped, tag = 'input window, operand 2, single buffered']
    #allocation8 [shape = 'u8[32768]{0}', space=vmem, size = 0x8000, scoped, tag = 'input window, operand 3, single buffered']
    #allocation9 [shape = 's32[1]{0}', space=sflag, size = 0x4, scoped, tag = 'scoped memory for mlp_forward.1']
    #allocation10 [shape = 'u8[32768]{0}', space=vmem, size = 0x8000, scoped, tag = 'input window, operand 4, single buffered']
    #allocation11 [shape = 'u8[65536]{0}', space=vmem, size = 0x10000, scoped, tag = 'output window, operand 0']
    %11 = vsyncpa [#allocation3], 0
    %s12 = scalar_lea.sflag [#allocation3], 1
    %13 = vsyncpa %s12, 0
    %14 = vsyncpa [#allocation6], 0
    %15 = vsyncpa [#allocation9], 0
    %16 = vsyncpa [#allocation4], 0
    %s17 = scalar_lea.sflag [#allocation4], 1
    %18 = vsyncpa %s17, 0
    loop: start=0, step=1, limit=4
    $region2: #{mlp_forward.1} parent=1 // loop_pre_header
      _
    $region3: #{mlp_forward.1} parent=1 // loop_header
      %s20 = sphi 0, %s24
      %p21 = scmp.ge.s32.totalorder %s20, 4
      %s30 = sphi 0, %s32
      %s33 = sphi 0, %s30
      %s34 = sphi 0, %s33
      %s50 = sphi 0, %s34
      %s54 = sphi 0, %s54
      %s56 = sphi 0, %s54
      %s57 = sphi 0, %s56
      %s71 = sphi 0, %s57
      %s75 = sphi 0, %s75
      %s77 = sphi 0, %s75
      %s78 = sphi 0, %s77
      %s92 = sphi 0, %s78
      %s96 = sphi 0, %s96
      %s98 = sphi 0, %s96
      %s99 = sphi 0, %s98
      %s113 = sphi 0, %s99
      %s117 = sphi 0, %s117
      %s119 = sphi 0, %s117
      %s120 = sphi 0, %s119
      %s134 = sphi 0, %s120
      %s138 = sphi 0, %s138
      %s140 = sphi 0, %s138
      %s141 = sphi 0, %s140
      %s155 = sphi 0, %s141
      %s161 = sphi 0, %s163
      %s164 = sphi 0, %s161
      %s165 = sphi 0, %s164
      %s181 = sphi 0, %s165
    $region4: #{mlp_forward.1} parent=1 // loop_header_branch
      %23 = sbr.rel (%p21) target = $region8
    $region5: #{mlp_forward.1} parent=1 // loop_body
      %s25 = ssub.s32 %s20, 1
      %s26 = ssub.s32 %s20, 2
      %s27 = sadd.s32 %s20, 1
      %s28 = ssub.s32 %s20, %s27
      %p29 = scmp.eq.s32.totalorder %s28, 0
      %s31 = sadd.s32 %s30, 1
      %s32 = scalar_select %p29, %s30, %s31
      %p35 = pneg %p29
      %p36 = scmp.eq.s32.totalorder %s20, 1
      %p37 = por %p35, %p36
      %p38 = scmp.ne.s32.totalorder %s30, %s33
      %p39 = scmp.eq.s32.totalorder %s20, 0
      %p40 = por %p38, %p39
      %p41 = scmp.ne.s32.totalorder %s30, %s33
      %p42 = scmp.eq.s32.totalorder %s25, 1
      %p43 = por %p41, %p42
      %p44 = scmp.ne.s32.totalorder %s33, %s34
      %p45 = scmp.eq.s32.totalorder %s25, 0
      %p46 = por %p44, %p45
      %p47 = scmp.ne.s32.totalorder %s33, %s34
      %p48 = scmp.eq.s32.totalorder %s26, 1
      %p49 = por %p47, %p48
      %p51 = scmp.ne.s32.totalorder %s34, %s50
      %p52 = scmp.eq.s32.totalorder %s26, 0
      %p53 = por %p51, %p52
      %s55 = sadd.s32 %s54, 1
      %p58 = scmp.eq.s32.totalorder %s20, 1
      %p59 = scmp.ne.s32.totalorder %s54, %s56
      %p60 = scmp.eq.s32.totalorder %s20, 0
      %p61 = por %p59, %p60
      %p62 = scmp.ne.s32.totalorder %s54, %s56
      %p63 = scmp.eq.s32.totalorder %s25, 1
      %p64 = por %p62, %p63
      %p65 = scmp.ne.s32.totalorder %s56, %s57
      %p66 = scmp.eq.s32.totalorder %s25, 0
      %p67 = por %p65, %p66
      %p68 = scmp.ne.s32.totalorder %s56, %s57
      %p69 = scmp.eq.s32.totalorder %s26, 1
      %p70 = por %p68, %p69
      %p72 = scmp.ne.s32.totalorder %s57, %s71
      %p73 = scmp.eq.s32.totalorder %s26, 0
      %p74 = por %p72, %p73
      %s76 = sadd.s32 %s75, 1
      %p79 = scmp.eq.s32.totalorder %s20, 1
      %p80 = scmp.ne.s32.totalorder %s75, %s77
      %p81 = scmp.eq.s32.totalorder %s20, 0
      %p82 = por %p80, %p81
      %p83 = scmp.ne.s32.totalorder %s75, %s77
      %p84 = scmp.eq.s32.totalorder %s25, 1
      %p85 = por %p83, %p84
      %p86 = scmp.ne.s32.totalorder %s77, %s78
      %p87 = scmp.eq.s32.totalorder %s25, 0
      %p88 = por %p86, %p87
      %p89 = scmp.ne.s32.totalorder %s77, %s78
      %p90 = scmp.eq.s32.totalorder %s26, 1
      %p91 = por %p89, %p90
      %p93 = scmp.ne.s32.totalorder %s78, %s92
      %p94 = scmp.eq.s32.totalorder %s26, 0
      %p95 = por %p93, %p94
      %s97 = sadd.s32 %s96, 1
      %p100 = scmp.eq.s32.totalorder %s20, 1
      %p101 = scmp.ne.s32.totalorder %s96, %s98
      %p102 = scmp.eq.s32.totalorder %s20, 0
      %p103 = por %p101, %p102
      %p104 = scmp.ne.s32.totalorder %s96, %s98
      %p105 = scmp.eq.s32.totalorder %s25, 1
      %p106 = por %p104, %p105
      %p107 = scmp.ne.s32.totalorder %s98, %s99
      %p108 = scmp.eq.s32.totalorder %s25, 0
      %p109 = por %p107, %p108
      %p110 = scmp.ne.s32.totalorder %s98, %s99
      %p111 = scmp.eq.s32.totalorder %s26, 1
      %p112 = por %p110, %p111
      %p114 = scmp.ne.s32.totalorder %s99, %s113
      %p115 = scmp.eq.s32.totalorder %s26, 0
      %p116 = por %p114, %p115
      %s118 = sadd.s32 %s117, 1
      %p121 = scmp.eq.s32.totalorder %s20, 1
      %p122 = scmp.ne.s32.totalorder %s117, %s119
      %p123 = scmp.eq.s32.totalorder %s20, 0
      %p124 = por %p122, %p123
      %p125 = scmp.ne.s32.totalorder %s117, %s119
      %p126 = scmp.eq.s32.totalorder %s25, 1
      %p127 = por %p125, %p126
      %p128 = scmp.ne.s32.totalorder %s119, %s120
      %p129 = scmp.eq.s32.totalorder %s25, 0
      %p130 = por %p128, %p129
      %p131 = scmp.ne.s32.totalorder %s119, %s120
      %p132 = scmp.eq.s32.totalorder %s26, 1
      %p133 = por %p131, %p132
      %p135 = scmp.ne.s32.totalorder %s120, %s134
      %p136 = scmp.eq.s32.totalorder %s26, 0
      %p137 = por %p135, %p136
      %s139 = sadd.s32 %s138, 1
      %p142 = scmp.eq.s32.totalorder %s20, 1
      %p143 = scmp.ne.s32.totalorder %s138, %s140
      %p144 = scmp.eq.s32.totalorder %s20, 0
      %p145 = por %p143, %p144
      %p146 = scmp.ne.s32.totalorder %s138, %s140
      %p147 = scmp.eq.s32.totalorder %s25, 1
      %p148 = por %p146, %p147
      %p149 = scmp.ne.s32.totalorder %s140, %s141
      %p150 = scmp.eq.s32.totalorder %s25, 0
      %p151 = por %p149, %p150
      %p152 = scmp.ne.s32.totalorder %s140, %s141
      %p153 = scmp.eq.s32.totalorder %s26, 1
      %p154 = por %p152, %p153
      %p156 = scmp.ne.s32.totalorder %s141, %s155
      %p157 = scmp.eq.s32.totalorder %s26, 0
      %p158 = por %p156, %p157
      %s159 = ssub.s32 %s20, %s27
      %p160 = scmp.eq.s32.totalorder %s159, 0
      %s162 = sadd.s32 %s161, 1
      %s163 = scalar_select %p160, %s161, %s162
      %p166 = pneg %p160
      %p167 = scmp.eq.s32.totalorder %s20, 1
      %p168 = por %p166, %p167
      %p169 = scmp.ne.s32.totalorder %s161, %s164
      %p170 = scmp.eq.s32.totalorder %s20, 0
      %p171 = por %p169, %p170
      %p172 = scmp.ne.s32.totalorder %s161, %s164
      %p173 = scmp.eq.s32.totalorder %s25, 1
      %p174 = por %p172, %p173
      %p175 = scmp.ne.s32.totalorder %s164, %s165
      %p176 = scmp.eq.s32.totalorder %s25, 0
      %p177 = por %p175, %p176
      %p178 = scmp.ne.s32.totalorder %s164, %s165
      %p179 = scmp.eq.s32.totalorder %s26, 1
      %p180 = por %p178, %p179
      %p182 = scmp.ne.s32.totalorder %s165, %s181
      %p183 = scmp.eq.s32.totalorder %s26, 0
      %p184 = por %p182, %p183
      %p185 = scmp.le.s32.totalorder 1, %s20
      %p186 = scmp.lt.s32.totalorder %s20, 3
      %p187 = pnand %p185, %p186
      %p188 = pneg %p187
      // Predicated region
      $region9: #{mlp_forward.1} parent=5 // pred_check
        _
      $region10: #{mlp_forward.1} parent=5 // pred_check_branch
        %190 = sbr.rel (%p187) target = $region12
      $region11: #{mlp_forward.1} parent=5 // pred_region
        %s191 = ssub.s32 %s20, 1
        // Predicated region
        $region13: #{mlp_forward.1} parent=11 // pred_check
          %p192 = pneg %p67
        $region14: #{mlp_forward.1} parent=11 // pred_check_branch
          %194 = sbr.rel (%p192) target = $region16
        $region15: #{mlp_forward.1} parent=11 // pred_region
          %s196 = ssub.s32 1024, 1024
          %197 = vsyncadd [#allocation6], %s196
          %s198 = sshll.u32 [#allocation5], 4
          %s199 = int_to_ptr.vmem [resolvable:$true] %s198
          %204 = dma.hbm_to_vmem [thread:$0]  %s1, 1024, %s199, [#allocation6], 64, 64, 4
        $region16: #{mlp_forward.1} parent=11 // pred_fallthru
          _
        // Predicated region
        $region17: #{mlp_forward.1} parent=11 // pred_check
          %p205 = pneg %p88
        $region18: #{mlp_forward.1} parent=11 // pred_check_branch
          %207 = sbr.rel (%p205) target = $region20
        $region19: #{mlp_forward.1} parent=11 // pred_region
          %s209 = ssub.s32 1024, 1024
          %210 = vsyncadd [#allocation6], %s209
          %s211 = sshll.u32 [#allocation7], 4
          %s212 = int_to_ptr.vmem [resolvable:$true] %s211
          %217 = dma.hbm_to_vmem [thread:$0]  %s2, 1024, %s212, [#allocation6], 64, 64, 4
        $region20: #{mlp_forward.1} parent=11 // pred_fallthru
          _
        // Predicated region
        $region21: #{mlp_forward.1} parent=11 // pred_check
          %p218 = pneg %p109
        $region22: #{mlp_forward.1} parent=11 // pred_check_branch
          %220 = sbr.rel (%p218) target = $region24
        $region23: #{mlp_forward.1} parent=11 // pred_region
          %s222 = ssub.s32 1024, 1024
          %223 = vsyncadd [#allocation9], %s222
          %s224 = sshll.u32 [#allocation8], 4
          %s225 = int_to_ptr.vmem [resolvable:$true] %s224
          %230 = dma.hbm_to_vmem [thread:$0]  %s3, 1024, %s225, [#allocation9], 64, 64, 4
        $region24: #{mlp_forward.1} parent=11 // pred_fallthru
          _
        // Predicated region
        $region25: #{mlp_forward.1} parent=11 // pred_check
          %p231 = pneg %p130
        $region26: #{mlp_forward.1} parent=11 // pred_check_branch
          %233 = sbr.rel (%p231) target = $region28
        $region27: #{mlp_forward.1} parent=11 // pred_region
          %s235 = ssub.s32 1024, 1024
          %236 = vsyncadd [#allocation9], %s235
          %s237 = sshll.u32 [#allocation10], 4
          %s238 = int_to_ptr.vmem [resolvable:$true] %s237
          %243 = dma.hbm_to_vmem [thread:$0]  %s4, 1024, %s238, [#allocation9], 64, 64, 4
        $region28: #{mlp_forward.1} parent=11 // pred_fallthru
          _
        // Predicated region
        $region29: #{mlp_forward.1} parent=11 // pred_check
          %p244 = pneg %p151
        $region30: #{mlp_forward.1} parent=11 // pred_check_branch
          %246 = sbr.rel (%p244) target = $region32
        $region31: #{mlp_forward.1} parent=11 // pred_region
          _
        $region32: #{mlp_forward.1} parent=11 // pred_fallthru
          _
      $region12: #{mlp_forward.1} parent=5 // pred_fallthru
        _
      %p247 = scmp.lt.s32.totalorder %s20, 2
      // Predicated region
      $region33: #{mlp_forward.1} parent=5 // pred_check
        %p248 = pneg %p247
      $region34: #{mlp_forward.1} parent=5 // pred_check_branch
        %250 = sbr.rel (%p248) target = $region36
      $region35: #{mlp_forward.1} parent=5 // pred_region
        // Predicated region
        $region37: #{mlp_forward.1} parent=35 // pred_check
          %p251 = pneg %p40
        $region38: #{mlp_forward.1} parent=35 // pred_check_branch
          %253 = sbr.rel (%p251) target = $region40
        $region39: #{mlp_forward.1} parent=35 // pred_region
          %s254 = sand.u32 %s30, 1
          %s255 = scalar_lea.sflag [#allocation3], %s254
          %s256 = sand.u32 %s30, 1
          %s257 = smul.addr %s256, 64
          %s258 = scalar_lea.vmem [#allocation2], %s257
          %s259 = smul.u32 4, %s20
          %s261 = ssub.s32 1024, 1024
          %262 = vsyncadd %s255, %s261
          %s263 = smul.addr %s259, 2
          %s264 = smul.addr %s263, 128
          %s265 = scalar_lea.hbm %s0, %s264
          %s266 = sshll.u32 %s258, 4
          %s267 = int_to_ptr.vmem [resolvable:$true] %s266
          %272 = dma.hbm_to_vmem [thread:$0]  %s265, 1024, %s267, %s255, 128, 128, 8
        $region40: #{mlp_forward.1} parent=35 // pred_fallthru
          _
      $region36: #{mlp_forward.1} parent=5 // pred_fallthru
        _
      %p273 = scmp.le.s32.totalorder 1, %s20
      %p274 = scmp.lt.s32.totalorder %s20, 3
      %p275 = pnand %p273, %p274
      %p276 = pneg %p275
      // Predicated region
      $region41: #{mlp_forward.1} parent=5 // pred_check
        _
      $region42: #{mlp_forward.1} parent=5 // pred_check_branch
        %278 = sbr.rel (%p275) target = $region44
      $region43: #{mlp_forward.1} parent=5 // pred_region
        %s279 = ssub.s32 %s20, 1
        %s280 = sand.u32 %s33, 1
        %s281 = scalar_lea.sflag [#allocation3], %s280
        %s282 = sand.u32 %s33, 1
        %s283 = smul.addr %s282, 64
        %s284 = scalar_lea.vmem [#allocation2], %s283
        // Predicated region
        $region45: #{mlp_forward.1} parent=43 // pred_check
          %p285 = pneg %p46
        $region46: #{mlp_forward.1} parent=43 // pred_check_branch
          %287 = sbr.rel (%p285) target = $region48
        $region47: #{mlp_forward.1} parent=43 // pred_region
          %288 = dma.done %s281, 1024
        $region48: #{mlp_forward.1} parent=43 // pred_fallthru
          _
        // Predicated region
        $region49: #{mlp_forward.1} parent=43 // pred_check
          %p289 = pneg %p67
        $region50: #{mlp_forward.1} parent=43 // pred_check_branch
          %291 = sbr.rel (%p289) target = $region52
        $region51: #{mlp_forward.1} parent=43 // pred_region
          %292 = dma.done [#allocation6], 1024
        $region52: #{mlp_forward.1} parent=43 // pred_fallthru
          _
        // Predicated region
        $region53: #{mlp_forward.1} parent=43 // pred_check
          %p293 = pneg %p88
        $region54: #{mlp_forward.1} parent=43 // pred_check_branch
          %295 = sbr.rel (%p293) target = $region56
        $region55: #{mlp_forward.1} parent=43 // pred_region
          %296 = dma.done [#allocation6], 1024
        $region56: #{mlp_forward.1} parent=43 // pred_fallthru
          _
        // Predicated region
        $region57: #{mlp_forward.1} parent=43 // pred_check
          %p297 = pneg %p109
        $region58: #{mlp_forward.1} parent=43 // pred_check_branch
          %299 = sbr.rel (%p297) target = $region60
        $region59: #{mlp_forward.1} parent=43 // pred_region
          %300 = dma.done [#allocation9], 1024
        $region60: #{mlp_forward.1} parent=43 // pred_fallthru
          _
        // Predicated region
        $region61: #{mlp_forward.1} parent=43 // pred_check
          %p301 = pneg %p130
        $region62: #{mlp_forward.1} parent=43 // pred_check_branch
          %303 = sbr.rel (%p301) target = $region64
        $region63: #{mlp_forward.1} parent=43 // pred_region
          %304 = dma.done [#allocation9], 1024
        $region64: #{mlp_forward.1} parent=43 // pred_fallthru
          _
        %s305 = sand.u32 %s33, 1
        %s306 = scalar_lea.sflag [#allocation3], %s305
        %s307 = sand.u32 %s33, 1
        %s308 = smul.addr %s307, 64
        %s309 = scalar_lea.vmem [#allocation2], %s308
        %p310 = pneg %p46
        %p311 = pneg %p43
        %p312 = pneg %p67
        %p313 = pneg %p64
        %p314 = pneg %p88
        %p315 = pneg %p85
        %p316 = pneg %p109
        %p317 = pneg %p106
        %p318 = pneg %p130
        %p319 = pneg %p127
        %p320 = pneg %p151
        %p321 = pneg %p148
        %p322 = pneg %p177
        %p323 = pneg %p174
        %s324 = sand.u32 %s164, 1
        %s325 = scalar_lea.sflag [#allocation4], %s324
        %s326 = sand.u32 %s164, 1
        %s327 = smul.addr %s326, 64
        %s328 = scalar_lea.vmem [#allocation11], %s327
        %s329 = smul.u32 4, %s25
        %s330 = smul.u32 4, %s25
        %v332 = vld [vmem:[%s284] sm:$0xff]
        %v333 = vld [vmem:[%s284 + $0x8] sm:$0xff]
        %v334 = vld [vmem:[%s284 + $0x10] sm:$0xff]
        %v335 = vld [vmem:[%s284 + $0x18] sm:$0xff]
        %v336 = vld [vmem:[%s284 + $0x20] sm:$0xff]
        %v337 = vld [vmem:[%s284 + $0x28] sm:$0xff]
        %v338 = vld [vmem:[%s284 + $0x30] sm:$0xff]
        %v339 = vld [vmem:[%s284 + $0x38] sm:$0xff]
        %v340 = vlaneseq
        %v341 = vshrl.u32 %v340, 7
        %v342 = vadd.s32 %v341, 8
        %v343 = vadd.s32 %v341, 16
        %v344 = vadd.s32 %v341, 24
        %v345 = vadd.s32 %v341, 32
        %v346 = vadd.s32 %v341, 40
        %v347 = vadd.s32 %v341, 48
        %v348 = vadd.s32 %v341, 56
        %vm349 = vcmp.lt.s32.totalorder %v341, 0
        %v350 = vsub.s32 0, %v341
        %v351 = vsel %vm349, %v350, %v341
        %v352 = vshrl.u32 %v351, 4
        %v353 = vand.u32 %v351, 15
        %v354 = vsub.s32 0, %v353
        %v355 = vsel %vm349, %v354, %v353
        %vm356 = vcmp.lt.s32.totalorder %v342, 0
        %v357 = vsub.s32 0, %v342
        %v358 = vsel %vm356, %v357, %v342
        %v359 = vshrl.u32 %v358, 4
        %v360 = vand.u32 %v358, 15
        %v361 = vsub.s32 0, %v360
        %v362 = vsel %vm356, %v361, %v360
        %vm363 = vcmp.lt.s32.totalorder %v343, 0
        %v364 = vsub.s32 0, %v343
        %v365 = vsel %vm363, %v364, %v343
        %v366 = vshrl.u32 %v365, 4
        %v367 = vand.u32 %v365, 15
        %v368 = vsub.s32 0, %v367
        %v369 = vsel %vm363, %v368, %v367
        %vm370 = vcmp.lt.s32.totalorder %v344, 0
        %v371 = vsub.s32 0, %v344
        %v372 = vsel %vm370, %v371, %v344
        %v373 = vshrl.u32 %v372, 4
        %v374 = vand.u32 %v372, 15
        %v375 = vsub.s32 0, %v374
        %v376 = vsel %vm370, %v375, %v374
        %vm377 = vcmp.lt.s32.totalorder %v345, 0
        %v378 = vsub.s32 0, %v345
        %v379 = vsel %vm377, %v378, %v345
        %v380 = vshrl.u32 %v379, 4
        %v381 = vand.u32 %v379, 15
        %v382 = vsub.s32 0, %v381
        %v383 = vsel %vm377, %v382, %v381
        %vm384 = vcmp.lt.s32.totalorder %v346, 0
        %v385 = vsub.s32 0, %v346
        %v386 = vsel %vm384, %v385, %v346
        %v387 = vshrl.u32 %v386, 4
        %v388 = vand.u32 %v386, 15
        %v389 = vsub.s32 0, %v388
        %v390 = vsel %vm384, %v389, %v388
        %vm391 = vcmp.lt.s32.totalorder %v347, 0
        %v392 = vsub.s32 0, %v347
        %v393 = vsel %vm391, %v392, %v347
        %v394 = vshrl.u32 %v393, 4
        %v395 = vand.u32 %v393, 15
        %v396 = vsub.s32 0, %v395
        %v397 = vsel %vm391, %v396, %v395
        %vm398 = vcmp.lt.s32.totalorder %v348, 0
        %v399 = vsub.s32 0, %v348
        %v400 = vsel %vm398, %v399, %v348
        %v401 = vshrl.u32 %v400, 4
        %v402 = vand.u32 %v400, 15
        %v403 = vsub.s32 0, %v402
        %v404 = vsel %vm398, %v403, %v402
        %vm405 = vcmp.ne.s32.totalorder %v355, 0
        %vm406 = vcmp.ne.s32.totalorder %v362, 0
        %vm407 = vcmp.ne.s32.totalorder %v369, 0
        %vm408 = vcmp.ne.s32.totalorder %v376, 0
        %vm409 = vcmp.ne.s32.totalorder %v383, 0
        %vm410 = vcmp.ne.s32.totalorder %v390, 0
        %vm411 = vcmp.ne.s32.totalorder %v397, 0
        %vm412 = vcmp.ne.s32.totalorder %v404, 0
        %vm413 = vcmp.lt.s32.totalorder %v355, 0
        %vm414 = vcmp.lt.s32.totalorder %v362, 0
        %vm415 = vcmp.lt.s32.totalorder %v369, 0
        %vm416 = vcmp.lt.s32.totalorder %v376, 0
        %vm417 = vcmp.lt.s32.totalorder %v383, 0
        %vm418 = vcmp.lt.s32.totalorder %v390, 0
        %vm419 = vcmp.lt.s32.totalorder %v397, 0
        %vm420 = vcmp.lt.s32.totalorder %v404, 0
        %vm421 = vmand %vm413, %vm405
        %vm422 = vmand %vm414, %vm406
        %vm423 = vmand %vm415, %vm407
        %vm424 = vmand %vm416, %vm408
        %vm425 = vmand %vm417, %vm409
        %vm426 = vmand %vm418, %vm410
        %vm427 = vmand %vm419, %vm411
        %vm428 = vmand %vm420, %vm412
        %v429 = vadd.s32 %v355, 16
        %v430 = vadd.s32 %v362, 16
        %v431 = vadd.s32 %v369, 16
        %v432 = vadd.s32 %v376, 16
        %v433 = vadd.s32 %v383, 16
        %v434 = vadd.s32 %v390, 16
        %v435 = vadd.s32 %v397, 16
        %v436 = vadd.s32 %v404, 16
        %v437 = vsel %vm421, %v429, %v355
        %v438 = vsel %vm422, %v430, %v362
        %v439 = vsel %vm423, %v431, %v369
        %v440 = vsel %vm424, %v432, %v376
        %v441 = vsel %vm425, %v433, %v383
        %v442 = vsel %vm426, %v434, %v390
        %v443 = vsel %vm427, %v435, %v397
        %v444 = vsel %vm428, %v436, %v404
        %vm445 = vcmp.eq.s32.totalorder %v437, 0
        %vm446 = vcmp.eq.s32.totalorder %v438, 0
        %vm447 = vcmp.eq.s32.totalorder %v439, 0
        %vm448 = vcmp.eq.s32.totalorder %v440, 0
        %vm449 = vcmp.eq.s32.totalorder %v441, 0
        %vm450 = vcmp.eq.s32.totalorder %v442, 0
        %vm451 = vcmp.eq.s32.totalorder %v443, 0
        %vm452 = vcmp.eq.s32.totalorder %v444, 0
        %v453 = vrot.slane %v332, 7
        %v454 = vrot.slane %v333, 7
        %v455 = vrot.slane %v334, 7
        %v456 = vrot.slane %v335, 7
        %v457 = vrot.slane %v336, 7
        %v458 = vrot.slane %v337, 7
        %v459 = vrot.slane %v338, 7
        %v460 = vrot.slane %v339, 7
        %vm461 = vcmp.lt.s32.totalorder %v341, 1
        %v462 = vsel %vm461, %v459, %v460
        %v463 = vsel %vm461, %v458, %v459
        %v464 = vsel %vm461, %v457, %v458
        %v465 = vsel %vm461, %v456, %v457
        %v466 = vsel %vm461, %v455, %v456
        %v467 = vsel %vm461, %v454, %v455
        %v468 = vsel %vm461, %v453, %v454
        %v469 = vsel %vm461, %v460, %v453
        %v470 = vsel %vm445, 0.0, %v469
        %v471 = vsel %vm446, 0.0, %v468
        %v472 = vsel %vm447, 0.0, %v467
        %v473 = vsel %vm448, 0.0, %v466
        %v474 = vsel %vm449, 0.0, %v465
        %v475 = vsel %vm450, 0.0, %v464
        %v476 = vsel %vm451, 0.0, %v463
        %v477 = vsel %vm452, 0.0, %v462
        %vm478 = vcmp.eq.s32.totalorder %v437, 15
        %vm479 = vcmp.eq.s32.totalorder %v438, 15
        %vm480 = vcmp.eq.s32.totalorder %v439, 15
        %vm481 = vcmp.eq.s32.totalorder %v440, 15
        %vm482 = vcmp.eq.s32.totalorder %v441, 15
        %vm483 = vcmp.eq.s32.totalorder %v442, 15
        %vm484 = vcmp.eq.s32.totalorder %v443, 15
        %vm485 = vcmp.eq.s32.totalorder %v444, 15
        %v486 = vrot.slane %v332, 1
        %v487 = vrot.slane %v333, 1
        %v488 = vrot.slane %v334, 1
        %v489 = vrot.slane %v335, 1
        %v490 = vrot.slane %v336, 1
        %v491 = vrot.slane %v337, 1
        %v492 = vrot.slane %v338, 1
        %v493 = vrot.slane %v339, 1
        %vm494 = vcmp.lt.s32.totalorder %v341, 7
        %v495 = vsel %vm494, %v492, %v493
        %v496 = vsel %vm494, %v491, %v492
        %v497 = vsel %vm494, %v490, %v491
        %v498 = vsel %vm494, %v489, %v490
        %v499 = vsel %vm494, %v488, %v489
        %v500 = vsel %vm494, %v487, %v488
        %v501 = vsel %vm494, %v486, %v487
        %v502 = vsel %vm494, %v493, %v486
        %v503 = vsel %vm478, 0.0, %v501
        %v504 = vsel %vm479, 0.0, %v500
        %v505 = vsel %vm480, 0.0, %v499
        %v506 = vsel %vm481, 0.0, %v498
        %v507 = vsel %vm482, 0.0, %v497
        %v508 = vsel %vm483, 0.0, %v496
        %v509 = vsel %vm484, 0.0, %v495
        %v510 = vsel %vm485, 0.0, %v502
        %v511 = vpack.c.bf16 %v333, %v332
        %v512 = vpack.c.bf16 %v335, %v334
        %v513 = vpack.c.bf16 %v337, %v336
        %v514 = vpack.c.bf16 %v339, %v338
        %v515 = vld [vmem:[#allocation7] sm:$0xf]
        %v516 = vld [vmem:[#allocation7 + $0x4] sm:$0xf]
        %v517 = vld [vmem:[#allocation7 + $0x8] sm:$0xf]
        %v518 = vld [vmem:[#allocation7 + $0xc] sm:$0xf]
        %v519 = vld [vmem:[#allocation7 + $0x10] sm:$0xf]
        %v520 = vld [vmem:[#allocation7 + $0x14] sm:$0xf]
        %v521 = vld [vmem:[#allocation7 + $0x18] sm:$0xf]
        %v522 = vld [vmem:[#allocation7 + $0x1c] sm:$0xf]
        %v523 = vld [vmem:[#allocation7 + $0x20] sm:$0xf]
        %v524 = vld [vmem:[#allocation7 + $0x24] sm:$0xf]
        %v525 = vld [vmem:[#allocation7 + $0x28] sm:$0xf]
        %v526 = vld [vmem:[#allocation7 + $0x2c] sm:$0xf]
        %v527 = vld [vmem:[#allocation7 + $0x30] sm:$0xf]
        %v528 = vld [vmem:[#allocation7 + $0x34] sm:$0xf]
        %v529 = vld [vmem:[#allocation7 + $0x38] sm:$0xf]
        %v530 = vld [vmem:[#allocation7 + $0x3c] sm:$0xf]
        %v531 = vpack.c.bf16 %v471, %v470
        %v532 = vpack.c.bf16 %v473, %v472
        %v533 = vpack.c.bf16 %v475, %v474
        %v534 = vpack.c.bf16 %v477, %v476
        %v535 = vld [vmem:[#allocation5] sm:$0xf]
        %v536 = vld [vmem:[#allocation5 + $0x4] sm:$0xf]
        %v537 = vld [vmem:[#allocation5 + $0x8] sm:$0xf]
        %v538 = vld [vmem:[#allocation5 + $0xc] sm:$0xf]
        %v539 = vld [vmem:[#allocation5 + $0x10] sm:$0xf]
        %v540 = vld [vmem:[#allocation5 + $0x14] sm:$0xf]
        %v541 = vld [vmem:[#allocation5 + $0x18] sm:$0xf]
        %v542 = vld [vmem:[#allocation5 + $0x1c] sm:$0xf]
        %v543 = vld [vmem:[#allocation5 + $0x20] sm:$0xf]
        %v544 = vld [vmem:[#allocation5 + $0x24] sm:$0xf]
        %v545 = vld [vmem:[#allocation5 + $0x28] sm:$0xf]
        %v546 = vld [vmem:[#allocation5 + $0x2c] sm:$0xf]
        %v547 = vld [vmem:[#allocation5 + $0x30] sm:$0xf]
        %v548 = vld [vmem:[#allocation5 + $0x34] sm:$0xf]
        %v549 = vld [vmem:[#allocation5 + $0x38] sm:$0xf]
        %v550 = vld [vmem:[#allocation5 + $0x3c] sm:$0xf]
        %v567 = vunpack.c.l.b16 %v535
        %v568 = vunpack.c.l.b16 %v536
        %v569 = vunpack.c.l.b16 %v537
        %v570 = vunpack.c.l.b16 %v538
        %v571 = vunpack.c.l.b16 %v539
        %v572 = vunpack.c.l.b16 %v540
        %v573 = vunpack.c.l.b16 %v541
        %v574 = vunpack.c.l.b16 %v542
        %v575 = vunpack.c.l.b16 %v543
        %v576 = vunpack.c.l.b16 %v544
        %v577 = vunpack.c.l.b16 %v545
        %v578 = vunpack.c.l.b16 %v546
        %v579 = vunpack.c.l.b16 %v547
        %v580 = vunpack.c.l.b16 %v548
        %v581 = vunpack.c.l.b16 %v549
        %v582 = vunpack.c.l.b16 %v550
        %v583 = vpack.c.b16 %v568, %v567
        %v584 = vpack.c.b16 %v570, %v569
        %v585 = vpack.c.b16 %v572, %v571
        %v586 = vpack.c.b16 %v574, %v573
        %v587 = vpack.c.b16 %v576, %v575
        %v588 = vpack.c.b16 %v578, %v577
        %v589 = vpack.c.b16 %v580, %v579
        %v590 = vpack.c.b16 %v582, %v581
        %599 = vmatprep.subr.bf16.mxu0 0
        %600 = vmatpush1.bf16.msra.mxu0 %v590
        %601 = vmatprep.subr.bf16.mxu0 0
        %602 = vmatpush1.bf16.msra.mxu0 %v589
        %603 = vmatprep.subr.bf16.mxu0 0
        %604 = vmatpush1.bf16.msra.mxu0 %v588
        %605 = vmatprep.subr.bf16.mxu0 0
        %606 = vmatpush1.bf16.msra.mxu0 %v587
        %607 = vmatprep.subr.bf16.mxu0 0
        %608 = vmatpush1.bf16.msra.mxu0 %v586
        %609 = vmatprep.subr.bf16.mxu0 0
        %610 = vmatpush1.bf16.msra.mxu0 %v585
        %611 = vmatprep.subr.bf16.mxu0 0
        %612 = vmatpush1.bf16.msra.mxu0 %v584
        %613 = vmatprep.subr.bf16.mxu0 0
        %614 = vmatpush1.bf16.msra.mxu0 %v583
        %615 = vmatprep.subr.bf16.mxu0 0
        %616 = vmatpush2.bf16.msra.mxu0 0
        %617 = vmatprep.subr.bf16.mxu0 0
        %618 = vmatpush2.bf16.msra.mxu0 0
        %619 = vmatprep.subr.bf16.mxu0 0
        %620 = vmatpush2.bf16.msra.mxu0 0
        %621 = vmatprep.subr.bf16.mxu0 0
        %622 = vmatpush2.bf16.msra.mxu0 0
        %623 = vmatprep.subr.bf16.mxu0 0
        %624 = vmatpush2.bf16.msra.mxu0 0
        %625 = vmatprep.subr.bf16.mxu0 0
        %626 = vmatpush2.bf16.msra.mxu0 0
        %627 = vmatprep.subr.bf16.mxu0 0
        %628 = vmatpush2.bf16.msra.mxu0 0
        %629 = vmatprep.subr.bf16.mxu0 0
        %630 = vmatpush2.bf16.msra.mxu0 0
        %631 = vmatprep.mubr.bf16.mxu0 0
        %632 = vmatmul.mubr.bf16.gmra.mxu0 %v531
        %v633 = vpop.f32.mrf.mxu0
        %v634 = vadd.f32 0.0, %v633
        %v635 = vpop.f32.mrf.mxu0
        %v636 = vpop.f32.mrf.mxu0
        %v637 = vadd.f32 0.0, %v636
        %v638 = vpop.f32.mrf.mxu0
        %639 = vmatprep.mubr.bf16.mxu0 0
        %640 = vmatmul.mubr.bf16.gmra.mxu0 %v532
        %v641 = vpop.f32.mrf.mxu0
        %v642 = vadd.f32 0.0, %v641
        %v643 = vpop.f32.mrf.mxu0
        %v644 = vpop.f32.mrf.mxu0
        %v645 = vadd.f32 0.0, %v644
        %v646 = vpop.f32.mrf.mxu0
        %647 = vmatprep.mubr.bf16.mxu0 0
        %648 = vmatmul.mubr.bf16.gmra.mxu0 %v533
        %v649 = vpop.f32.mrf.mxu0
        %v650 = vadd.f32 0.0, %v649
        %v651 = vpop.f32.mrf.mxu0
        %v652 = vpop.f32.mrf.mxu0
        %v653 = vadd.f32 0.0, %v652
        %v654 = vpop.f32.mrf.mxu0
        %655 = vmatprep.mubr.bf16.mxu0 0
        %656 = vmatmul.mubr.bf16.gmra.mxu0 %v534
        %v657 = vpop.f32.mrf.mxu0
        %v658 = vadd.f32 0.0, %v657
        %v659 = vpop.f32.mrf.mxu0
        %v660 = vpop.f32.mrf.mxu0
        %v661 = vadd.f32 0.0, %v660
        %v662 = vpop.f32.mrf.mxu0
        %663 = vdwg.mxu0
        %v680 = vunpack.c.l.b16 %v515
        %v681 = vunpack.c.l.b16 %v516
        %v682 = vunpack.c.l.b16 %v517
        %v683 = vunpack.c.l.b16 %v518
        %v684 = vunpack.c.l.b16 %v519
        %v685 = vunpack.c.l.b16 %v520
        %v686 = vunpack.c.l.b16 %v521
        %v687 = vunpack.c.l.b16 %v522
        %v688 = vunpack.c.l.b16 %v523
        %v689 = vunpack.c.l.b16 %v524
        %v690 = vunpack.c.l.b16 %v525
        %v691 = vunpack.c.l.b16 %v526
        %v692 = vunpack.c.l.b16 %v527
        %v693 = vunpack.c.l.b16 %v528
        %v694 = vunpack.c.l.b16 %v529
        %v695 = vunpack.c.l.b16 %v530
        %v696 = vpack.c.b16 %v681, %v680
        %v697 = vpack.c.b16 %v683, %v682
        %v698 = vpack.c.b16 %v685, %v684
        %v699 = vpack.c.b16 %v687, %v686
        %v700 = vpack.c.b16 %v689, %v688
        %v701 = vpack.c.b16 %v691, %v690
        %v702 = vpack.c.b16 %v693, %v692
        %v703 = vpack.c.b16 %v695, %v694
        %712 = vmatprep.subr.bf16.mxu0 0
        %713 = vmatpush1.bf16.msra.mxu0 %v703
        %714 = vmatprep.subr.bf16.mxu0 0
        %715 = vmatpush1.bf16.msra.mxu0 %v702
        %716 = vmatprep.subr.bf16.mxu0 0
        %717 = vmatpush1.bf16.msra.mxu0 %v701
        %718 = vmatprep.subr.bf16.mxu0 0
        %719 = vmatpush1.bf16.msra.mxu0 %v700
        %720 = vmatprep.subr.bf16.mxu0 0
        %721 = vmatpush1.bf16.msra.mxu0 %v699
        %722 = vmatprep.subr.bf16.mxu0 0
        %723 = vmatpush1.bf16.msra.mxu0 %v698
        %724 = vmatprep.subr.bf16.mxu0 0
        %725 = vmatpush1.bf16.msra.mxu0 %v697
        %726 = vmatprep.subr.bf16.mxu0 0
        %727 = vmatpush1.bf16.msra.mxu0 %v696
        %728 = vmatprep.subr.bf16.mxu0 0
        %729 = vmatpush2.bf16.msra.mxu0 0
        %730 = vmatprep.subr.bf16.mxu0 0
        %731 = vmatpush2.bf16.msra.mxu0 0
        %732 = vmatprep.subr.bf16.mxu0 0
        %733 = vmatpush2.bf16.msra.mxu0 0
        %734 = vmatprep.subr.bf16.mxu0 0
        %735 = vmatpush2.bf16.msra.mxu0 0
        %736 = vmatprep.subr.bf16.mxu0 0
        %737 = vmatpush2.bf16.msra.mxu0 0
        %738 = vmatprep.subr.bf16.mxu0 0
        %739 = vmatpush2.bf16.msra.mxu0 0
        %740 = vmatprep.subr.bf16.mxu0 0
        %741 = vmatpush2.bf16.msra.mxu0 0
        %742 = vmatprep.subr.bf16.mxu0 0
        %743 = vmatpush2.bf16.msra.mxu0 0
        %744 = vmatprep.mubr.bf16.mxu0 0
        %745 = vmatmul.mubr.bf16.gmra.mxu0 %v511
        %v746 = vpop.f32.mrf.mxu0
        %v747 = vadd.f32 %v634, %v746
        %v748 = vpop.f32.mrf.mxu0
        %v749 = vpop.f32.mrf.mxu0
        %v750 = vadd.f32 %v637, %v749
        %v751 = vpop.f32.mrf.mxu0
        %752 = vmatprep.mubr.bf16.mxu0 0
        %753 = vmatmul.mubr.bf16.gmra.mxu0 %v512
        %v754 = vpop.f32.mrf.mxu0
        %v755 = vadd.f32 %v642, %v754
        %v756 = vpop.f32.mrf.mxu0
        %v757 = vpop.f32.mrf.mxu0
        %v758 = vadd.f32 %v645, %v757
        %v759 = vpop.f32.mrf.mxu0
        %760 = vmatprep.mubr.bf16.mxu0 0
        %761 = vmatmul.mubr.bf16.gmra.mxu0 %v513
        %v762 = vpop.f32.mrf.mxu0
        %v763 = vadd.f32 %v650, %v762
        %v764 = vpop.f32.mrf.mxu0
        %v765 = vpop.f32.mrf.mxu0
        %v766 = vadd.f32 %v653, %v765
        %v767 = vpop.f32.mrf.mxu0
        %768 = vmatprep.mubr.bf16.mxu0 0
        %769 = vmatmul.mubr.bf16.gmra.mxu0 %v514
        %v770 = vpop.f32.mrf.mxu0
        %v771 = vadd.f32 %v658, %v770
        %v772 = vpop.f32.mrf.mxu0
        %v773 = vpop.f32.mrf.mxu0
        %v774 = vadd.f32 %v661, %v773
        %v775 = vpop.f32.mrf.mxu0
        %776 = vdwg.mxu0
        %v777 = vpack.c.bf16 %v504, %v503
        %v778 = vpack.c.bf16 %v506, %v505
        %v779 = vpack.c.bf16 %v508, %v507
        %v780 = vpack.c.bf16 %v510, %v509
        %v781 = vld [vmem:[#allocation8] sm:$0xf]
        %v782 = vld [vmem:[#allocation8 + $0x4] sm:$0xf]
        %v783 = vld [vmem:[#allocation8 + $0x8] sm:$0xf]
        %v784 = vld [vmem:[#allocation8 + $0xc] sm:$0xf]
        %v785 = vld [vmem:[#allocation8 + $0x10] sm:$0xf]
        %v786 = vld [vmem:[#allocation8 + $0x14] sm:$0xf]
        %v787 = vld [vmem:[#allocation8 + $0x18] sm:$0xf]
        %v788 = vld [vmem:[#allocation8 + $0x1c] sm:$0xf]
        %v789 = vld [vmem:[#allocation8 + $0x20] sm:$0xf]
        %v790 = vld [vmem:[#allocation8 + $0x24] sm:$0xf]
        %v791 = vld [vmem:[#allocation8 + $0x28] sm:$0xf]
        %v792 = vld [vmem:[#allocation8 + $0x2c] sm:$0xf]
        %v793 = vld [vmem:[#allocation8 + $0x30] sm:$0xf]
        %v794 = vld [vmem:[#allocation8 + $0x34] sm:$0xf]
        %v795 = vld [vmem:[#allocation8 + $0x38] sm:$0xf]
        %v796 = vld [vmem:[#allocation8 + $0x3c] sm:$0xf]
        %v813 = vunpack.c.l.b16 %v781
        %v814 = vunpack.c.l.b16 %v782
        %v815 = vunpack.c.l.b16 %v783
        %v816 = vunpack.c.l.b16 %v784
        %v817 = vunpack.c.l.b16 %v785
        %v818 = vunpack.c.l.b16 %v786
        %v819 = vunpack.c.l.b16 %v787
        %v820 = vunpack.c.l.b16 %v788
        %v821 = vunpack.c.l.b16 %v789
        %v822 = vunpack.c.l.b16 %v790
        %v823 = vunpack.c.l.b16 %v791
        %v824 = vunpack.c.l.b16 %v792
        %v825 = vunpack.c.l.b16 %v793
        %v826 = vunpack.c.l.b16 %v794
        %v827 = vunpack.c.l.b16 %v795
        %v828 = vunpack.c.l.b16 %v796
        %v829 = vpack.c.b16 %v814, %v813
        %v830 = vpack.c.b16 %v816, %v815
        %v831 = vpack.c.b16 %v818, %v817
        %v832 = vpack.c.b16 %v820, %v819
        %v833 = vpack.c.b16 %v822, %v821
        %v834 = vpack.c.b16 %v824, %v823
        %v835 = vpack.c.b16 %v826, %v825
        %v836 = vpack.c.b16 %v828, %v827
        %845 = vmatprep.subr.bf16.mxu0 0
        %846 = vmatpush1.bf16.msra.mxu0 %v836
        %847 = vmatprep.subr.bf16.mxu0 0
        %848 = vmatpush1.bf16.msra.mxu0 %v835
        %849 = vmatprep.subr.bf16.mxu0 0
        %850 = vmatpush1.bf16.msra.mxu0 %v834
        %851 = vmatprep.subr.bf16.mxu0 0
        %852 = vmatpush1.bf16.msra.mxu0 %v833
        %853 = vmatprep.subr.bf16.mxu0 0
        %854 = vmatpush1.bf16.msra.mxu0 %v832
        %855 = vmatprep.subr.bf16.mxu0 0
        %856 = vmatpush1.bf16.msra.mxu0 %v831
        %857 = vmatprep.subr.bf16.mxu0 0
        %858 = vmatpush1.bf16.msra.mxu0 %v830
        %859 = vmatprep.subr.bf16.mxu0 0
        %860 = vmatpush1.bf16.msra.mxu0 %v829
        %861 = vmatprep.subr.bf16.mxu0 0
        %862 = vmatpush2.bf16.msra.mxu0 0
        %863 = vmatprep.subr.bf16.mxu0 0
        %864 = vmatpush2.bf16.msra.mxu0 0
        %865 = vmatprep.subr.bf16.mxu0 0
        %866 = vmatpush2.bf16.msra.mxu0 0
        %867 = vmatprep.subr.bf16.mxu0 0
        %868 = vmatpush2.bf16.msra.mxu0 0
        %869 = vmatprep.subr.bf16.mxu0 0
        %870 = vmatpush2.bf16.msra.mxu0 0
        %871 = vmatprep.subr.bf16.mxu0 0
        %872 = vmatpush2.bf16.msra.mxu0 0
        %873 = vmatprep.subr.bf16.mxu0 0
        %874 = vmatpush2.bf16.msra.mxu0 0
        %875 = vmatprep.subr.bf16.mxu0 0
        %876 = vmatpush2.bf16.msra.mxu0 0
        %877 = vmatprep.mubr.bf16.mxu0 0
        %878 = vmatmul.mubr.bf16.gmra.mxu0 %v777
        %v879 = vpop.f32.mrf.mxu0
        %v880 = vadd.f32 0.0, %v879
        %v881 = vpop.f32.mrf.mxu0
        %v882 = vpop.f32.mrf.mxu0
        %v883 = vadd.f32 0.0, %v882
        %v884 = vpop.f32.mrf.mxu0
        %885 = vmatprep.mubr.bf16.mxu0 0
        %886 = vmatmul.mubr.bf16.gmra.mxu0 %v778
        %v887 = vpop.f32.mrf.mxu0
        %v888 = vadd.f32 0.0, %v887
        %v889 = vpop.f32.mrf.mxu0
        %v890 = vpop.f32.mrf.mxu0
        %v891 = vadd.f32 0.0, %v890
        %v892 = vpop.f32.mrf.mxu0
        %893 = vmatprep.mubr.bf16.mxu0 0
        %894 = vmatmul.mubr.bf16.gmra.mxu0 %v779
        %v895 = vpop.f32.mrf.mxu0
        %v896 = vadd.f32 0.0, %v895
        %v897 = vpop.f32.mrf.mxu0
        %v898 = vpop.f32.mrf.mxu0
        %v899 = vadd.f32 0.0, %v898
        %v900 = vpop.f32.mrf.mxu0
        %901 = vmatprep.mubr.bf16.mxu0 0
        %902 = vmatmul.mubr.bf16.gmra.mxu0 %v780
        %v903 = vpop.f32.mrf.mxu0
        %v904 = vadd.f32 0.0, %v903
        %v905 = vpop.f32.mrf.mxu0
        %v906 = vpop.f32.mrf.mxu0
        %v907 = vadd.f32 0.0, %v906
        %v908 = vpop.f32.mrf.mxu0
        %909 = vdwg.mxu0
        %v910 = vadd.f32 %v747, %v880
        %v911 = vadd.f32 %v750, %v883
        %v912 = vadd.f32 %v755, %v888
        %v913 = vadd.f32 %v758, %v891
        %v914 = vadd.f32 %v763, %v896
        %v915 = vadd.f32 %v766, %v899
        %v916 = vadd.f32 %v771, %v904
        %v917 = vadd.f32 %v774, %v907
        %v918 = vadd.f32 %v332, %v333
        %v919 = vrot.slane %v918, 4
        %v920 = vadd.f32 %v918, %v919
        %v921 = vrot.slane %v920, 2
        %v922 = vadd.f32 %v920, %v921
        %v923 = vrot.slane %v922, 1
        %v924 = vadd.f32 %v922, %v923
        %v925 = vadd.f32 %v334, %v335
        %v926 = vrot.slane %v925, 4
        %v927 = vadd.f32 %v925, %v926
        %v928 = vrot.slane %v927, 2
        %v929 = vadd.f32 %v927, %v928
        %v930 = vrot.slane %v929, 1
        %v931 = vadd.f32 %v929, %v930
        %v932 = vadd.f32 %v336, %v337
        %v933 = vrot.slane %v932, 4
        %v934 = vadd.f32 %v932, %v933
        %v935 = vrot.slane %v934, 2
        %v936 = vadd.f32 %v934, %v935
        %v937 = vrot.slane %v936, 1
        %v938 = vadd.f32 %v936, %v937
        %v939 = vadd.f32 %v338, %v339
        %v940 = vrot.slane %v939, 4
        %v941 = vadd.f32 %v939, %v940
        %v942 = vrot.slane %v941, 2
        %v943 = vadd.f32 %v941, %v942
        %v944 = vrot.slane %v943, 1
        %v945 = vadd.f32 %v943, %v944
        %v946 = vrcp.pop 16.0
        %v947 = vmul.f32 %v924, %v946
        %v948 = vmul.f32 %v931, %v946
        %v949 = vmul.f32 %v938, %v946
        %v950 = vmul.f32 %v945, %v946
        %v951 = vpack.c.bf16 %v947, %v947
        %v952 = vpack.c.bf16 %v948, %v948
        %v953 = vpack.c.bf16 %v949, %v949
        %v954 = vpack.c.bf16 %v950, %v950
        %v955 = vld [vmem:[#allocation10] sm:$0xf]
        %v956 = vld [vmem:[#allocation10 + $0x4] sm:$0xf]
        %v957 = vld [vmem:[#allocation10 + $0x8] sm:$0xf]
        %v958 = vld [vmem:[#allocation10 + $0xc] sm:$0xf]
        %v959 = vld [vmem:[#allocation10 + $0x10] sm:$0xf]
        %v960 = vld [vmem:[#allocation10 + $0x14] sm:$0xf]
        %v961 = vld [vmem:[#allocation10 + $0x18] sm:$0xf]
        %v962 = vld [vmem:[#allocation10 + $0x1c] sm:$0xf]
        %v963 = vld [vmem:[#allocation10 + $0x20] sm:$0xf]
        %v964 = vld [vmem:[#allocation10 + $0x24] sm:$0xf]
        %v965 = vld [vmem:[#allocation10 + $0x28] sm:$0xf]
        %v966 = vld [vmem:[#allocation10 + $0x2c] sm:$0xf]
        %v967 = vld [vmem:[#allocation10 + $0x30] sm:$0xf]
        %v968 = vld [vmem:[#allocation10 + $0x34] sm:$0xf]
        %v969 = vld [vmem:[#allocation10 + $0x38] sm:$0xf]
        %v970 = vld [vmem:[#allocation10 + $0x3c] sm:$0xf]
        %v971 = vld [vmem:[%s5] sm:$0x1]
        %v973 = vlaneseq
        %v974 = vshrl.u32 %v973, 7
        %v975 = vsub.s32 0, %v974
        %v976 = vrot.slane %v971, %v975
        %v982 = vunpack.c.l.b16 %v951
        %v983 = vunpack.c.l.b16 %v952
        %v984 = vunpack.c.l.b16 %v953
        %v985 = vunpack.c.l.b16 %v954
        %vm986 = vcmask 1041409
        %v987 = vsel %vm986, %v983, %v982
        %vm988 = vcmask 1042434
        %v989 = vsel %vm988, %v984, %v987
        %vm990 = vcmask 1043459
        %v991 = vsel %vm990, %v985, %v989
        %v992 = vpack.c.b16 %v991, %v991
        %v1010 = vunpack.c.l.b16 %v955
        %v1011 = vunpack.c.l.b16 %v956
        %v1012 = vunpack.c.l.b16 %v957
        %v1013 = vunpack.c.l.b16 %v958
        %v1014 = vunpack.c.l.b16 %v959
        %v1015 = vunpack.c.l.b16 %v960
        %v1016 = vunpack.c.l.b16 %v961
        %v1017 = vunpack.c.l.b16 %v962
        %v1018 = vunpack.c.l.b16 %v963
        %v1019 = vunpack.c.l.b16 %v964
        %v1020 = vunpack.c.l.b16 %v965
        %v1021 = vunpack.c.l.b16 %v966
        %v1022 = vunpack.c.l.b16 %v967
        %v1023 = vunpack.c.l.b16 %v968
        %v1024 = vunpack.c.l.b16 %v969
        %v1025 = vunpack.c.l.b16 %v970
        %v1026 = vpack.c.b16 %v1011, %v1010
        %v1027 = vpack.c.b16 %v1013, %v1012
        %v1028 = vpack.c.b16 %v1015, %v1014
        %v1029 = vpack.c.b16 %v1017, %v1016
        %v1030 = vpack.c.b16 %v1019, %v1018
        %v1031 = vpack.c.b16 %v1021, %v1020
        %v1032 = vpack.c.b16 %v1023, %v1022
        %v1033 = vpack.c.b16 %v1025, %v1024
        %1042 = vmatprep.subr.bf16.mxu0 0
        %1043 = vmatpush1.bf16.msra.mxu0 %v1033
        %1044 = vmatprep.subr.bf16.mxu0 0
        %1045 = vmatpush1.bf16.msra.mxu0 %v1032
        %1046 = vmatprep.subr.bf16.mxu0 0
        %1047 = vmatpush1.bf16.msra.mxu0 %v1031
        %1048 = vmatprep.subr.bf16.mxu0 0
        %1049 = vmatpush1.bf16.msra.mxu0 %v1030
        %1050 = vmatprep.subr.bf16.mxu0 0
        %1051 = vmatpush1.bf16.msra.mxu0 %v1029
        %1052 = vmatprep.subr.bf16.mxu0 0
        %1053 = vmatpush1.bf16.msra.mxu0 %v1028
        %1054 = vmatprep.subr.bf16.mxu0 0
        %1055 = vmatpush1.bf16.msra.mxu0 %v1027
        %1056 = vmatprep.subr.bf16.mxu0 0
        %1057 = vmatpush1.bf16.msra.mxu0 %v1026
        %1058 = vmatprep.subr.bf16.mxu0 0
        %1059 = vmatpush2.bf16.msra.mxu0 0
        %1060 = vmatprep.subr.bf16.mxu0 0
        %1061 = vmatpush2.bf16.msra.mxu0 0
        %1062 = vmatprep.subr.bf16.mxu0 0
        %1063 = vmatpush2.bf16.msra.mxu0 0
        %1064 = vmatprep.subr.bf16.mxu0 0
        %1065 = vmatpush2.bf16.msra.mxu0 0
        %1066 = vmatprep.subr.bf16.mxu0 0
        %1067 = vmatpush2.bf16.msra.mxu0 0
        %1068 = vmatprep.subr.bf16.mxu0 0
        %1069 = vmatpush2.bf16.msra.mxu0 0
        %1070 = vmatprep.subr.bf16.mxu0 0
        %1071 = vmatpush2.bf16.msra.mxu0 0
        %1072 = vmatprep.subr.bf16.mxu0 0
        %1073 = vmatpush2.bf16.msra.mxu0 0
        %1074 = vmatprep.mubr.bf16.mxu0 0
        %1075 = vmatmul.mubr.bf16.gmra.mxu0 %v992
        %v1076 = vpop.f32.mrf.mxu0
        %v1077 = vadd.f32 %v976, %v1076
        %v1078 = vpop.f32.mrf.mxu0
        %v1079 = vpop.f32.mrf.mxu0
        %v1080 = vpop.f32.mrf.mxu0
        %1081 = vdwg.mxu0
        %v1084 = vunpack.c.l.s4 1966171168
        %v1085 = vunpack.c.0.s8 %v1084
        %v1086 = vlaneseq
        %v1087 = vshrl.u32 %v1086, 7
        %v1088 = vsub.s32 %v1085, %v1087
        %v1089 = vrot.slane %v1077, %v1088
        %v1090 = vcombine.high %v1089, %v1089
        %v1092 = vunpack.c.l.s4 1966171168
        %v1093 = vunpack.c.0.s8 %v1092
        %v1094 = vlaneseq
        %v1095 = vshrl.u32 %v1094, 7
        %v1096 = vsub.s32 %v1093, %v1095
        %v1097 = vrot.slane %v1089, %v1096
        %v1099 = vunpack.c.l.s4 1966171168
        %v1100 = vunpack.c.0.s8 %v1099
        %v1101 = vlaneseq
        %v1102 = vshrl.u32 %v1101, 7
        %v1103 = vsub.s32 %v1100, %v1102
        %v1104 = vrot.slane %v1090, %v1103
        %v1105 = vcombine.high %v1097, %v1097
        %v1106 = vcombine.high %v1104, %v1104
        %v1107 = vlaneseq
        %v1108 = vshrl.u32 %v1107, 7
        %v1109 = vsub.s32 0, %v1108
        %v1110 = vrot.slane %v1097, %v1109
        %v1111 = vlaneseq
        %v1112 = vshrl.u32 %v1111, 7
        %v1113 = vsub.s32 0, %v1112
        %v1114 = vrot.slane %v1104, %v1113
        %v1115 = vlaneseq
        %v1116 = vshrl.u32 %v1115, 7
        %v1117 = vsub.s32 0, %v1116
        %v1118 = vrot.slane %v1105, %v1117
        %v1119 = vlaneseq
        %v1120 = vshrl.u32 %v1119, 7
        %v1121 = vsub.s32 0, %v1120
        %v1122 = vrot.slane %v1106, %v1121
        %v1127 = vadd.f32 %v910, %v1110
        %v1128 = vadd.f32 %v911, %v1110
        %v1129 = vadd.f32 %v912, %v1114
        %v1130 = vadd.f32 %v913, %v1114
        %v1131 = vadd.f32 %v914, %v1118
        %v1132 = vadd.f32 %v915, %v1118
        %v1133 = vadd.f32 %v916, %v1122
        %v1134 = vadd.f32 %v917, %v1122
        %1135 = vst [vmem:[%s328] sm:$0xff] %v1127
        %1136 = vst [vmem:[%s328 + $0x8] sm:$0xff] %v1128
        %1137 = vst [vmem:[%s328 + $0x10] sm:$0xff] %v1129
        %1138 = vst [vmem:[%s328 + $0x18] sm:$0xff] %v1130
        %1139 = vst [vmem:[%s328 + $0x20] sm:$0xff] %v1131
        %1140 = vst [vmem:[%s328 + $0x28] sm:$0xff] %v1132
        %1141 = vst [vmem:[%s328 + $0x30] sm:$0xff] %v1133
        %1142 = vst [vmem:[%s328 + $0x38] sm:$0xff] %v1134
        %s1143 = sand.u32 %s164, 1
        %s1144 = scalar_lea.sflag [#allocation4], %s1143
        %s1145 = sand.u32 %s164, 1
        %s1146 = smul.addr %s1145, 64
        %s1147 = scalar_lea.vmem [#allocation11], %s1146
        // Predicated region
        $region65: #{mlp_forward.1} parent=43 // pred_check
          %p1148 = pneg %p174
        $region66: #{mlp_forward.1} parent=43 // pred_check_branch
          %1150 = sbr.rel (%p1148) target = $region68
        $region67: #{mlp_forward.1} parent=43 // pred_region
          %s1151 = smul.u32 4, %s25
          %s1153 = ssub.s32 1024, 1024
          %1154 = vsyncadd %s1144, %s1153
          %s1155 = smul.addr %s1151, 2
          %s1156 = smul.addr %s1155, 128
          %s1157 = scalar_lea.hbm %s6, %s1156
          %s1158 = sshll.u32 %s1147, 4
          %s1159 = int_to_ptr.vmem [resolvable:$true] %s1158
          %1164 = dma.vmem_to_hbm [thread:$0]  %s1159, 1024, %s1157, %s1144, 128, 128, 8
        $region68: #{mlp_forward.1} parent=43 // pred_fallthru
          _
      $region44: #{mlp_forward.1} parent=5 // pred_fallthru
        _
      %p1165 = scmp.le.s32.totalorder 2, %s20
      // Predicated region
      $region69: #{mlp_forward.1} parent=5 // pred_check
        %p1166 = pneg %p1165
      $region70: #{mlp_forward.1} parent=5 // pred_check_branch
        %1168 = sbr.rel (%p1166) target = $region72
      $region71: #{mlp_forward.1} parent=5 // pred_region
        %s1169 = ssub.s32 %s20, 2
        // Predicated region
        $region73: #{mlp_forward.1} parent=71 // pred_check
          %p1170 = pneg %p180
        $region74: #{mlp_forward.1} parent=71 // pred_check_branch
          %1172 = sbr.rel (%p1170) target = $region76
        $region75: #{mlp_forward.1} parent=71 // pred_region
          %s1173 = sand.u32 %s165, 1
          %s1174 = scalar_lea.sflag [#allocation4], %s1173
          %s1175 = sand.u32 %s165, 1
          %s1176 = smul.addr %s1175, 64
          %s1177 = scalar_lea.vmem [#allocation11], %s1176
          %1178 = dma.done %s1174, 1024
        $region76: #{mlp_forward.1} parent=71 // pred_fallthru
          _
      $region72: #{mlp_forward.1} parent=5 // pred_fallthru
        _
    $region6: #{mlp_forward.1} parent=1 // loop_footer
      %s24 = sadd.s32 1, %s20
    $region7: #{mlp_forward.1} parent=1 // loop_footer_branch
      %19 = sbr.rel target = $region3
    $region8: #{mlp_forward.1} parent=1 // loop_exit
      _
    %1179 = vsyncpa [#allocation3], 1
    %s1180 = scalar_lea.sflag [#allocation3], 1
    %1181 = vsyncpa %s1180, 1
    %1182 = vsyncpa [#allocation6], 1
    %1183 = vsyncpa [#allocation9], 1
    %1184 = vsyncpa [#allocation4], 1
    %s1185 = scalar_lea.sflag [#allocation4], 1
    %1186 = vsyncpa %s1185, 1

</llo_original>
